<compile_context>
chip_gen: v5e
topology: v5e:2x2
jax: 0.10.0
libtpu: 0.0.40
codegen_flags: <defaults>
</compile_context>

<pallas_src>
import functools
from math import sqrt

import jax
import jax.numpy as jnp
from jax import lax
from jax.experimental import pallas as pl
from jax.experimental.pallas import tpu as pltpu

LN_EPS = 1e-5
_INV_SQRT2 = 1.0 / sqrt(2.0)


# ---------------------------------------------------------------------------
# Hardware introspection (best effort, safe fallbacks)
# ---------------------------------------------------------------------------
def _device_kind():
    try:
        return jax.devices()[0].device_kind.lower()
    except Exception:
        return ""


def _vmem_capacity_bytes():
    try:
        cap = int(pltpu.get_tpu_info().vmem_capacity_bytes)
        if cap > 0:
            return cap
    except Exception:
        pass
    return 64 * 2**20          # conservative (v7x-sized) fallback


def _is_megacore():
    kind = _device_kind()
    return ("v7" in kind) or ("7x" in kind)


def _has_bf16_vpu():
    kind = _device_kind()
    # v5e and older have no packed-bf16 VPU; keep the GELU epilogue f32 there.
    for tag in ("v5 lite", "v5e", "v5lite", "v4", "v3", "v2"):
        if tag in kind:
            return False
    return True


# ---------------------------------------------------------------------------
# Kernel bodies
# ---------------------------------------------------------------------------
def _gelu(h, approximate):
    if approximate:
        # tanh-approximate GELU: transcendental goes to the (otherwise idle)
        # EUP.  Not bit-identical to torch.nn.GELU()'s exact-erf default.
        return jax.nn.gelu(h, approximate=True)
    # Exact erf GELU (matches torch.nn.GELU()).  The erf polynomial is
    # evaluated in f32; surrounding arithmetic stays in h.dtype (bf16 on
    # v6e/v7x bf16 models -> packed VPU ops).
    erf_term = lax.erf(h.astype(jnp.float32) * _INV_SQRT2).astype(h.dtype)
    return 0.5 * h * (1.0 + erf_term)


def _layernorm_f32(x, gamma, beta):
    x = x.astype(jnp.float32)
    mean = jnp.mean(x, axis=-1, keepdims=True)
    centered = x - mean
    var = jnp.mean(centered * centered, axis=-1, keepdims=True)
    xn = centered * lax.rsqrt(var + LN_EPS)
    return xn * gamma.astype(jnp.float32) + beta.astype(jnp.float32)


def _ffn_kernel_single(x_ref, gamma_ref, beta_ref, w1_ref, b1_ref, w2_ref,
                       b2_ref, o_ref, *, gelu_dtype, approximate):
    """th == hidden: weights are resident; no accumulator round trip."""
    xn = _layernorm_f32(x_ref[...], gamma_ref[...], beta_ref[...])

    h = jnp.dot(xn.astype(w1_ref.dtype), w1_ref[...],
                preferred_element_type=jnp.float32)
    h = h.astype(gelu_dtype) + b1_ref[...].astype(gelu_dtype)
    h = _gelu(h, approximate)
    # Dropout(p=0.0) is identity (inference semantics).

    y = jnp.dot(h.astype(w2_ref.dtype), w2_ref[...],
                preferred_element_type=jnp.float32)
    o_ref[...] = (y + b2_ref[...].astype(jnp.float32)).astype(o_ref.dtype)


def _ffn_kernel_multi(x_ref, gamma_ref, beta_ref, w1_ref, b1_ref, w2_ref,
                      b2_ref, o_ref, xn_ref, acc_ref, *, gelu_dtype,
                      approximate):
    """Hidden axis split across grid axis 1 (arbitrary / innermost)."""
    k = pl.program_id(1)

    @pl.when(k == 0)
    def _():
        xn = _layernorm_f32(x_ref[...], gamma_ref[...], beta_ref[...])
        # Cache normalized rows in the MXU-operand dtype across hidden steps.
        xn_ref[...] = xn.astype(xn_ref.dtype)

    h = jnp.dot(xn_ref[...], w1_ref[...], preferred_element_type=jnp.float32)
    h = h.astype(gelu_dtype) + b1_ref[...].astype(gelu_dtype)
    h = _gelu(h, approximate)

    contrib = jnp.dot(h.astype(w2_ref.dtype), w2_ref[...],
                      preferred_element_type=jnp.float32)

    @pl.when(k == 0)
    def _():
        acc_ref[...] = contrib          # assign (no zero-init + add)

    @pl.when(k > 0)
    def _():
        acc_ref[...] += contrib

    @pl.when(k == pl.num_programs(1) - 1)
    def _():
        y = acc_ref[...] + b2_ref[...].astype(jnp.float32)
        o_ref[...] = y.astype(o_ref.dtype)


# ---------------------------------------------------------------------------
# Tiling heuristics
# ---------------------------------------------------------------------------
def _round_up(x, m):
    return (x + m - 1) // m * m


def _working_set_bytes(tm, th, dim, xbytes, wbytes, single):
    ws = (4 * tm * dim * xbytes                 # x + out blocks (double buffered)
          + 2 * 2 * dim * th * wbytes           # W1 + W2 blocks (2 buffers each)
          + 2 * (3 * dim + th) * wbytes         # gamma, beta, b1, b2 blocks
          + 2 * tm * th * 4)                    # live f32 hidden tile + temporaries
    if not single:
        ws += tm * dim * (4 + wbytes)           # f32 accumulator + xn cache
    return ws


def _select_tiles(n_rows, dim, hidden, xbytes, wbytes, vmem_budget,
                  megacore, row_tile, hidden_tile):
    sub = 8 if xbytes >= 4 else 16              # sublane granularity (f32/bf16)

    tm_cap = _round_up(min(max(n_rows, sub), 512), sub)
    tm_cands = []
    for t in (512, 256, 128, 64, 32, 16, 8):
        t = min(_round_up(t, sub), tm_cap)
        if t not in tm_cands:
            tm_cands.append(t)

    th_splits = [c for c in (2048, 1024, 512, 256, 128)
                 if c < hidden and hidden % c == 0]

    if row_tile is not None and hidden_tile is not None:
        tm, th = row_tile, hidden_tile
    elif hidden_tile is not None:
        th = hidden_tile
        tm = next((t for t in tm_cands
                   if _working_set_bytes(t, th, dim, xbytes, wbytes,
                                         th == hidden) <= vmem_budget),
                  tm_cands[-1])
    else:
        cand_tms = [row_tile] if row_tile is not None else tm_cands
        tm = th = None
        # 1) Prefer th == hidden: constant weight block index across the whole
        #    grid -> W1/W2 streamed from HBM exactly once.
        for t in cand_tms:
            if _working_set_bytes(t, hidden, dim, xbytes, wbytes, True) <= vmem_budget:
                tm, th = t, hidden
                break
        # 2) Otherwise split hidden; larger tm first (weight-byte arithmetic
        #    intensity == tm), then larger th.
        if tm is None:
            for t in cand_tms:
                for c in th_splits:
                    if _working_set_bytes(t, c, dim, xbytes, wbytes, False) <= vmem_budget:
                        tm, th = t, c
                        break
                if tm is not None:
                    break
        if tm is None:
            tm = row_tile if row_tile is not None else tm_cands[-1]
            th = th_splits[-1] if th_splits else hidden

    # Megacore (v7x, 2 TCs): make sure the "parallel" row axis has >= 2 tiles
    # when the problem has enough rows to split.
    if megacore and row_tile is None and n_rows <= tm:
        tm_half = _round_up(-(-n_rows // 2), sub)
        if tm_half < n_rows:
            tm = tm_half

    return tm, th


# ---------------------------------------------------------------------------
# Public wrapper
# ---------------------------------------------------------------------------
def feedforward_pallas(x, gamma, beta, w1, b1, w2, b2, *,
                       row_tile=None, hidden_tile=None,
                       use_bf16_mxu=False, approximate_gelu=False,
                       interpret=False):
    """Fused LayerNorm -> Linear -> GELU -> Linear.  x: [..., dim]."""
    orig_shape = x.shape
    dim = orig_shape[-1]
    hidden = w1.shape[1]
    assert w1.shape == (dim, hidden) and w2.shape == (hidden, dim)
    assert gamma.shape == (dim,) and beta.shape == (dim,)
    assert b1.shape == (hidden,) and b2.shape == (dim,)
    if hidden_tile is not None:
        assert hidden % hidden_tile == 0
        assert hidden_tile == hidden or hidden_tile % 128 == 0

    x2 = x.reshape(-1, dim)
    n_rows = x2.shape[0]
    xbytes = jnp.dtype(x.dtype).itemsize

    # Opt-in: bf16 MXU operands (f32 accumulation) for f32 parameters.
    params_bf16 = (w1.dtype == jnp.bfloat16)
    if use_bf16_mxu and not params_bf16:
        w1c, w2c = w1.astype(jnp.bfloat16), w2.astype(jnp.bfloat16)
    else:
        w1c, w2c = w1, w2
    wbytes = jnp.dtype(w1c.dtype).itemsize

    # GELU / bias epilogue dtype: packed bf16 on v6e/v7x for bf16 models;
    # f32 on v5e (no bf16 VPU) and for f32 models.
    gelu_dtype = jnp.bfloat16 if (params_bf16 and _has_bf16_vpu()) else jnp.float32

    vmem_cap = _vmem_capacity_bytes()
    vmem_budget = max(32 * 2**20,
                      min(int(0.85 * vmem_cap), vmem_cap - 4 * 2**20))

    tm, th = _select_tiles(n_rows, dim, hidden, xbytes, wbytes, vmem_budget,
                           _is_megacore(), row_tile, hidden_tile)
    single = (th == hidden)

    # Handle ragged batch*seq by zero-padding rows (sliced off afterwards).
    n_pad = _round_up(n_rows, tm)
    if n_pad != n_rows:
        x2 = jnp.pad(x2, ((0, n_pad - n_rows), (0, 0)))
    n_row_tiles = n_pad // tm

    # Keep bias/affine params 2D so they sit in (sublane, lane) layout.
    gamma2 = gamma.reshape(1, dim)
    beta2 = beta.reshape(1, dim)
    b1_2 = b1.reshape(1, hidden)
    b2_2 = b2.reshape(1, dim)

    ws = _working_set_bytes(tm, th, dim, xbytes, wbytes, single)
    vmem_limit = int(min(vmem_budget, max(32 * 2**20, 2 * ws)))

    # Accurate traffic estimate: weights are re-read per row tile when split.
    weight_bytes = 2 * dim * hidden * wbytes
    weight_reads = 1 if single else n_row_tiles
    cost = pl.CostEstimate(
        flops=int(4 * n_pad * dim * hidden),
        transcendentals=int(n_pad * hidden),
        bytes_accessed=int(2 * n_pad * dim * xbytes
                           + weight_reads * weight_bytes
                           + (3 * dim + hidden) * wbytes),
    )

    if single:
        kernel = functools.partial(_ffn_kernel_single,
                                   gelu_dtype=gelu_dtype,
                                   approximate=approximate_gelu)
        grid = (n_row_tiles,)
        in_specs = [
            pl.BlockSpec((tm, dim), lambda i: (i, 0)),        # x rows
            pl.BlockSpec((1, dim), lambda i: (0, 0)),         # gamma
            pl.BlockSpec((1, dim), lambda i: (0, 0)),         # beta
            pl.BlockSpec((dim, hidden), lambda i: (0, 0)),    # W1 (fetched once)
            pl.BlockSpec((1, hidden), lambda i: (0, 0)),      # b1
            pl.BlockSpec((hidden, dim), lambda i: (0, 0)),    # W2 (fetched once)
            pl.BlockSpec((1, dim), lambda i: (0, 0)),         # b2
        ]
        out_specs = pl.BlockSpec((tm, dim), lambda i: (i, 0))
        scratch_shapes = []
        dim_sem = ("parallel",)
    else:
        kernel = functools.partial(_ffn_kernel_multi,
                                   gelu_dtype=gelu_dtype,
                                   approximate=approximate_gelu)
        grid = (n_row_tiles, hidden // th)
        in_specs = [
            pl.BlockSpec((tm, dim), lambda i, k: (i, 0)),     # x rows
            pl.BlockSpec((1, dim), lambda i, k: (0, 0)),      # gamma
            pl.BlockSpec((1, dim), lambda i, k: (0, 0)),      # beta
            pl.BlockSpec((dim, th), lambda i, k: (0, k)),     # W1 (in, out)
            pl.BlockSpec((1, th), lambda i, k: (0, k)),       # b1
            pl.BlockSpec((th, dim), lambda i, k: (k, 0)),     # W2 (in, out)
            pl.BlockSpec((1, dim), lambda i, k: (0, 0)),      # b2
        ]
        out_specs = pl.BlockSpec((tm, dim), lambda i, k: (i, 0))
        scratch_shapes = [
            pltpu.VMEM((tm, dim), w1c.dtype),      # cached LayerNorm output
            pltpu.VMEM((tm, dim), jnp.float32),    # f32 output accumulator
        ]
        dim_sem = ("parallel", "arbitrary")

    out = pl.pallas_call(
        kernel,
        out_shape=jax.ShapeDtypeStruct((n_pad, dim), x.dtype),
        grid_spec=pltpu.PrefetchScalarGridSpec(
            num_scalar_prefetch=0,
            grid=grid,
            in_specs=in_specs,
            out_specs=out_specs,
            scratch_shapes=scratch_shapes,
        ),
        compiler_params=pltpu.CompilerParams(
            dimension_semantics=dim_sem,
            vmem_limit_bytes=vmem_limit,
        ),
        cost_estimate=cost,
        interpret=interpret,
    )(x2, gamma2, beta2, w1c, b1_2, w2c, b2_2)

    if n_pad != n_rows:
        out = out[:n_rows]
    return out.reshape(orig_shape)


# ---------------------------------------------------------------------------
# Parameters / reference / tests
# ---------------------------------------------------------------------------
def init_params(key, dim, hidden_dim, dtype=jnp.float32):
    """Deterministic synthetic parameters (PyTorch-like init ranges)."""
    k1, k2, k3, k4 = jax.random.split(key, 4)
    gamma = jnp.ones((dim,), dtype)               # LayerNorm default init
    beta = jnp.zeros((dim,), dtype)
    bound1 = 1.0 / sqrt(dim)
    w1 = jax.random.uniform(k1, (dim, hidden_dim), dtype, -bound1, bound1)
    b1 = jax.random.uniform(k2, (hidden_dim,), dtype, -bound1, bound1)
    bound2 = 1.0 / sqrt(hidden_dim)
    w2 = jax.random.uniform(k3, (hidden_dim, dim), dtype, -bound2, bound2)
    b2 = jax.random.uniform(k4, (dim,), dtype, -bound2, bound2)
    return gamma, beta, w1, b1, w2, b2


def feedforward_ref(x, gamma, beta, w1, b1, w2, b2):
    """Pure-JAX reference matching the PyTorch module (dropout p=0)."""
    x = x.astype(jnp.float32)
    mean = jnp.mean(x, axis=-1, keepdims=True)
    var = jnp.mean((x - mean) ** 2, axis=-1, keepdims=True)
    xn = (x - mean) / jnp.sqrt(var + LN_EPS) * gamma.astype(jnp.float32) \
         + beta.astype(jnp.float32)
    h = xn @ w1.astype(jnp.float32) + b1.astype(jnp.float32)
    h = 0.5 * h * (1.0 + lax.erf(h / sqrt(2.0)))
    return h @ w2.astype(jnp.float32) + b2.astype(jnp.float32)


if __name__ == "__main__":
    # --- Test 1: small f32 shapes, weight-resident single-step path ---
    batch, seq, dim, hidden_dim = 2, 8, 32, 64
    key = jax.random.PRNGKey(0)
    kx, kp = jax.random.split(key)
    x = jax.random.normal(kx, (batch, seq, dim), jnp.float32)
    params = init_params(kp, dim, hidden_dim)

    y = jax.block_until_ready(feedforward_pallas(x, *params))
    y_ref = feedforward_ref(x, *params)
    assert y.shape == x.shape and y.dtype == x.dtype
    assert jnp.allclose(y, y_ref, atol=1e-5, rtol=1e-5), "f32 mismatch vs reference"

    # --- Test 2: forced multi-step path — row padding (50 -> 64 with tm=16)
    #     and hidden-axis accumulation (256 = 2 x 128), f32 ---
    b2s, s2, d2, h2 = 2, 25, 128, 256
    kx2, kp2 = jax.random.split(jax.random.PRNGKey(1))
    x_big = jax.random.normal(kx2, (b2s, s2, d2), jnp.float32)
    params_big = init_params(kp2, d2, h2)
    y_big = jax.block_until_ready(
        feedforward_pallas(x_big, *params_big, row_tile=16, hidden_tile=128))
    y_big_ref = feedforward_ref(x_big, *params_big)
    assert jnp.allclose(y_big, y_big_ref, atol=1e-2, rtol=1e-2), \
        "tiled/accumulated path mismatch vs reference"

    # --- Test 3: bf16 params/activations (bf16 MXU operands, f32 accum,
    #     bf16 GELU epilogue on v6e/v7x) ---
    xb = x.astype(jnp.bfloat16)
    params_b = tuple(p.astype(jnp.bfloat16) for p in params)
    yb = jax.block_until_ready(feedforward_pallas(xb, *params_b))
    assert yb.shape == x.shape and yb.dtype == jnp.bfloat16
    drift = jnp.max(jnp.abs(yb.astype(jnp.float32) - y_ref))
    assert drift < 0.25, f"bf16 path drifted too far: {drift}"

    # --- Test 4: opt-in bf16 MXU path for an f32 model ---
    y_mix = jax.block_until_ready(feedforward_pallas(x, *params, use_bf16_mxu=True))
    assert y_mix.dtype == jnp.float32
    drift_mix = jnp.max(jnp.abs(y_mix - y_ref))
    assert drift_mix < 0.15, f"bf16-MXU path drifted too far: {drift_mix}"

    print("KERNEL_OK")
</pallas_src>

<mosaic_0001>
module attributes {stable_mosaic.version = 11 : i64} {
  func.func @_ffn_kernel_single(%arg0: i32, %arg1: memref<16x32xf32, #tpu.memory_space<vmem>>, %arg2: memref<1x32xf32, #tpu.memory_space<vmem>>, %arg3: memref<1x32xf32, #tpu.memory_space<vmem>>, %arg4: memref<32x64xf32, #tpu.memory_space<vmem>>, %arg5: memref<1x64xf32, #tpu.memory_space<vmem>>, %arg6: memref<64x32xf32, #tpu.memory_space<vmem>>, %arg7: memref<1x32xf32, #tpu.memory_space<vmem>>, %arg8: memref<16x32xf32, #tpu.memory_space<vmem>>) attributes {dimension_semantics = [#tpu.dimension_semantics<parallel>], iteration_bounds = array<i64: 1>, scalar_prefetch = 0 : i64, scratch_operands = 0 : i64, tpu.core_type = #tpu.core_type<tc>, window_params = [{transform_indices = @transform_0, window_bounds = array<i64: 16, 32>}, {pipeline_mode = #tpu.pipeline_mode<synchronous>, transform_indices = @transform_1, window_bounds = array<i64: 1, 32>}, {pipeline_mode = #tpu.pipeline_mode<synchronous>, transform_indices = @transform_2, window_bounds = array<i64: 1, 32>}, {pipeline_mode = #tpu.pipeline_mode<synchronous>, transform_indices = @transform_3, window_bounds = array<i64: 32, 64>}, {pipeline_mode = #tpu.pipeline_mode<synchronous>, transform_indices = @transform_4, window_bounds = array<i64: 1, 64>}, {pipeline_mode = #tpu.pipeline_mode<synchronous>, transform_indices = @transform_5, window_bounds = array<i64: 64, 32>}, {pipeline_mode = #tpu.pipeline_mode<synchronous>, transform_indices = @transform_6, window_bounds = array<i64: 1, 32>}, {transform_indices = @transform_7, window_bounds = array<i64: 16, 32>}]} {
    %c0 = arith.constant 0 : index
    %c0_0 = arith.constant 0 : index
    %0 = vector.load %arg1[%c0, %c0_0] : memref<16x32xf32, #tpu.memory_space<vmem>>, vector<16x32xf32>
    %c0_1 = arith.constant 0 : index
    %c0_2 = arith.constant 0 : index
    %1 = vector.load %arg2[%c0_1, %c0_2] : memref<1x32xf32, #tpu.memory_space<vmem>>, vector<1x32xf32>
    %c0_3 = arith.constant 0 : index
    %c0_4 = arith.constant 0 : index
    %2 = vector.load %arg3[%c0_3, %c0_4] : memref<1x32xf32, #tpu.memory_space<vmem>>, vector<1x32xf32>
    %cst = arith.constant dense<0.000000e+00> : vector<16xf32>
    %3 = vector.multi_reduction <add>, %0, %cst [1] : vector<16x32xf32> to vector<16xf32>
    %4 = vector.shape_cast %3 : vector<16xf32> to vector<16x1xf32>
    %cst_5 = arith.constant 3.200000e+01 : f32
    %5 = vector.broadcast %cst_5 : f32 to vector<16x1xf32>
    %6 = arith.divf %4, %5 : vector<16x1xf32>
    %7 = vector.broadcast %6 : vector<16x1xf32> to vector<16x32xf32>
    %8 = arith.subf %0, %7 : vector<16x32xf32>
    %9 = arith.mulf %8, %8 : vector<16x32xf32>
    %cst_6 = arith.constant dense<0.000000e+00> : vector<16xf32>
    %10 = vector.multi_reduction <add>, %9, %cst_6 [1] : vector<16x32xf32> to vector<16xf32>
    %11 = vector.shape_cast %10 : vector<16xf32> to vector<16x1xf32>
    %cst_7 = arith.constant 3.200000e+01 : f32
    %12 = vector.broadcast %cst_7 : f32 to vector<16x1xf32>
    %13 = arith.divf %11, %12 : vector<16x1xf32>
    %cst_8 = arith.constant 9.99999974E-6 : f32
    %14 = vector.broadcast %cst_8 : f32 to vector<16x1xf32>
    %15 = arith.addf %13, %14 : vector<16x1xf32>
    %16 = math.rsqrt %15 : vector<16x1xf32>
    %17 = vector.broadcast %16 : vector<16x1xf32> to vector<16x32xf32>
    %18 = arith.mulf %8, %17 : vector<16x32xf32>
    %19 = vector.broadcast %1 : vector<1x32xf32> to vector<16x32xf32>
    %20 = arith.mulf %18, %19 : vector<16x32xf32>
    %21 = vector.broadcast %2 : vector<1x32xf32> to vector<16x32xf32>
    %22 = arith.addf %20, %21 : vector<16x32xf32>
    %c0_9 = arith.constant 0 : index
    %c0_10 = arith.constant 0 : index
    %23 = vector.load %arg4[%c0_9, %c0_10] : memref<32x64xf32, #tpu.memory_space<vmem>>, vector<32x64xf32>
    %cst_11 = arith.constant dense<0.000000e+00> : vector<16x64xf32>
    %24 = tpu.matmul %22, %23, %cst_11 {dimension_numbers = #tpu.dot_dimension_numbers<[1], [0], [0], [1], [0, 0, 1, 1], [], []>} : vector<16x32xf32>, vector<32x64xf32>, vector<16x64xf32> -> vector<16x64xf32>
    %c0_12 = arith.constant 0 : index
    %c0_13 = arith.constant 0 : index
    %25 = vector.load %arg5[%c0_12, %c0_13] : memref<1x64xf32, #tpu.memory_space<vmem>>, vector<1x64xf32>
    %26 = vector.broadcast %25 : vector<1x64xf32> to vector<16x64xf32>
    %27 = arith.addf %24, %26 : vector<16x64xf32>
    %cst_14 = arith.constant 0.707106769 : f32
    %28 = vector.broadcast %cst_14 : f32 to vector<16x64xf32>
    %29 = arith.mulf %27, %28 : vector<16x64xf32>
    %30 = math.erf %29 : vector<16x64xf32>
    %cst_15 = arith.constant 5.000000e-01 : f32
    %31 = vector.broadcast %cst_15 : f32 to vector<16x64xf32>
    %32 = arith.mulf %31, %27 : vector<16x64xf32>
    %cst_16 = arith.constant 1.000000e+00 : f32
    %33 = vector.broadcast %cst_16 : f32 to vector<16x64xf32>
    %34 = arith.addf %33, %30 : vector<16x64xf32>
    %35 = arith.mulf %32, %34 : vector<16x64xf32>
    %c0_17 = arith.constant 0 : index
    %c0_18 = arith.constant 0 : index
    %36 = vector.load %arg6[%c0_17, %c0_18] : memref<64x32xf32, #tpu.memory_space<vmem>>, vector<64x32xf32>
    %cst_19 = arith.constant dense<0.000000e+00> : vector<16x32xf32>
    %37 = tpu.matmul %35, %36, %cst_19 {dimension_numbers = #tpu.dot_dimension_numbers<[1], [0], [0], [1], [0, 0, 1, 1], [], []>} : vector<16x64xf32>, vector<64x32xf32>, vector<16x32xf32> -> vector<16x32xf32>
    %c0_20 = arith.constant 0 : index
    %c0_21 = arith.constant 0 : index
    %38 = vector.load %arg7[%c0_20, %c0_21] : memref<1x32xf32, #tpu.memory_space<vmem>>, vector<1x32xf32>
    %39 = vector.broadcast %38 : vector<1x32xf32> to vector<16x32xf32>
    %40 = arith.addf %37, %39 : vector<16x32xf32>
    %c0_22 = arith.constant 0 : index
    %c0_23 = arith.constant 0 : index
    %41 = vector.load %arg8[%c0_22, %c0_23] : memref<16x32xf32, #tpu.memory_space<vmem>>, vector<16x32xf32>
    tpu.vector_store %arg8[%c0_22, %c0_23], %40 {strides = array<i32>} : memref<16x32xf32, #tpu.memory_space<vmem>>, vector<16x32xf32>,
    return
  }
  func.func @transform_0(%arg0: i32) -> (i32, i32) {
    %c0_i32 = arith.constant 0 : i32
    %c0_i32_0 = arith.constant 0 : i32
    return %arg0, %c0_i32 : i32, i32
  }
  func.func @transform_1(%arg0: i32) -> (i32, i32) {
    %c0_i32 = arith.constant 0 : i32
    %c0_i32_0 = arith.constant 0 : i32
    %c0_i32_1 = arith.constant 0 : i32
    return %c0_i32, %c0_i32_0 : i32, i32
  }
  func.func @transform_2(%arg0: i32) -> (i32, i32) {
    %c0_i32 = arith.constant 0 : i32
    %c0_i32_0 = arith.constant 0 : i32
    %c0_i32_1 = arith.constant 0 : i32
    return %c0_i32, %c0_i32_0 : i32, i32
  }
  func.func @transform_3(%arg0: i32) -> (i32, i32) {
    %c0_i32 = arith.constant 0 : i32
    %c0_i32_0 = arith.constant 0 : i32
    %c0_i32_1 = arith.constant 0 : i32
    return %c0_i32, %c0_i32_0 : i32, i32
  }
  func.func @transform_4(%arg0: i32) -> (i32, i32) {
    %c0_i32 = arith.constant 0 : i32
    %c0_i32_0 = arith.constant 0 : i32
    %c0_i32_1 = arith.constant 0 : i32
    return %c0_i32, %c0_i32_0 : i32, i32
  }
  func.func @transform_5(%arg0: i32) -> (i32, i32) {
    %c0_i32 = arith.constant 0 : i32
    %c0_i32_0 = arith.constant 0 : i32
    %c0_i32_1 = arith.constant 0 : i32
    return %c0_i32, %c0_i32_0 : i32, i32
  }
  func.func @transform_6(%arg0: i32) -> (i32, i32) {
    %c0_i32 = arith.constant 0 : i32
    %c0_i32_0 = arith.constant 0 : i32
    %c0_i32_1 = arith.constant 0 : i32
    return %c0_i32, %c0_i32_0 : i32, i32
  }
  func.func @transform_7(%arg0: i32) -> (i32, i32) {
    %c0_i32 = arith.constant 0 : i32
    %c0_i32_0 = arith.constant 0 : i32
    return %arg0, %c0_i32 : i32, i32
  }
}

</mosaic_0001>

<llo_original>
// kernel: tpu_custom_call.1
$region0: #{tpu_custom_call.1}
  #allocation0 [shape = 'u32[]', space=smem, size = 0x4, offset = 0x4, fixed_abs, tag = 'smem constant byte address 0x4 - core index']
  #allocation1 [shape = 'u32[72,128]{1,0:T(1,128)}', space=vmem, size = 0x9000, scoped, tag = 'internal scratch']
  %s0 = inlined_call_operand.vmem [shape: f32[16,32], index: 0, kind: input, shape index: {}]
  %s1 = inlined_call_operand.vmem [shape: f32[1,32], index: 1, kind: input, shape index: {}]
  %s2 = inlined_call_operand.vmem [shape: f32[1,32], index: 2, kind: input, shape index: {}]
  %s3 = inlined_call_operand.vmem [shape: f32[32,64], index: 3, kind: input, shape index: {}]
  %s4 = inlined_call_operand.vmem [shape: f32[1,64], index: 4, kind: input, shape index: {}]
  %s5 = inlined_call_operand.vmem [shape: f32[64,32], index: 5, kind: input, shape index: {}]
  %s6 = inlined_call_operand.vmem [shape: f32[1,32], index: 6, kind: input, shape index: {}]
  %s7 = inlined_call_operand.hbm [shape: f32[16,32], index: 7, kind: output, shape index: {}]
  %s8 = sld [smem:[#allocation0]]
  $region38: #{tpu_custom_call.1} parent=0
    _
  %s10 = ssub.s32 1, %s8
  %s11 = scalar_select 0, %s10, %s8
  $region1: #{tpu_custom_call.1} parent=0
    #allocation2 [shape = 'u8[8192]{0}', space=vmem, size = 0x2000, scoped, tag = 'output window, operand 0, single buffered']
    #allocation3 [shape = 's32[1]{0}', space=sflag, size = 0x4, scoped, tag = 'scoped memory for tpu_custom_call.1']
    %12 = vsyncpa [#allocation3], 0
    // Predicated region
    $region2: #{tpu_custom_call.1} parent=1 // pred_check
      _
    $region3: #{tpu_custom_call.1} parent=1 // pred_check_branch
      %14 = sbr.rel (0) target = $region5
    $region4: #{tpu_custom_call.1} parent=1 // pred_region
      _
    $region5: #{tpu_custom_call.1} parent=1 // pred_fallthru
      _
    // Predicated region
    $region6: #{tpu_custom_call.1} parent=1 // pred_check
      _
    $region7: #{tpu_custom_call.1} parent=1 // pred_check_branch
      %16 = sbr.rel (0) target = $region9
    $region8: #{tpu_custom_call.1} parent=1 // pred_region
      _
    $region9: #{tpu_custom_call.1} parent=1 // pred_fallthru
      _
    // Predicated region
    $region10: #{tpu_custom_call.1} parent=1 // pred_check
      _
    $region11: #{tpu_custom_call.1} parent=1 // pred_check_branch
      %18 = sbr.rel (0) target = $region13
    $region12: #{tpu_custom_call.1} parent=1 // pred_region
      _
    $region13: #{tpu_custom_call.1} parent=1 // pred_fallthru
      _
    // Predicated region
    $region14: #{tpu_custom_call.1} parent=1 // pred_check
      _
    $region15: #{tpu_custom_call.1} parent=1 // pred_check_branch
      %20 = sbr.rel (0) target = $region17
    $region16: #{tpu_custom_call.1} parent=1 // pred_region
      _
    $region17: #{tpu_custom_call.1} parent=1 // pred_fallthru
      _
    // Predicated region
    $region18: #{tpu_custom_call.1} parent=1 // pred_check
      _
    $region19: #{tpu_custom_call.1} parent=1 // pred_check_branch
      %22 = sbr.rel (0) target = $region21
    $region20: #{tpu_custom_call.1} parent=1 // pred_region
      _
    $region21: #{tpu_custom_call.1} parent=1 // pred_fallthru
      _
    // Predicated region
    $region22: #{tpu_custom_call.1} parent=1 // pred_check
      _
    $region23: #{tpu_custom_call.1} parent=1 // pred_check_branch
      %24 = sbr.rel (0) target = $region25
    $region24: #{tpu_custom_call.1} parent=1 // pred_region
      _
    $region25: #{tpu_custom_call.1} parent=1 // pred_fallthru
      _
    // Predicated region
    $region26: #{tpu_custom_call.1} parent=1 // pred_check
      _
    $region27: #{tpu_custom_call.1} parent=1 // pred_check_branch
      %26 = sbr.rel (0) target = $region29
    $region28: #{tpu_custom_call.1} parent=1 // pred_region
      _
    $region29: #{tpu_custom_call.1} parent=1 // pred_fallthru
      _
    %v27 = vld [vmem:[%s0] sm:$0xff]
    %v28 = vld [vmem:[%s0 + $0x8] sm:$0xff]
    %v29 = vld [vmem:[%s1] sm:$0x1]
    %v30 = vld [vmem:[%s2] sm:$0x1]
    %vm31 = vcmask 261120
    %v32 = vsel %vm31, %v27, 0.0
    %33 = vadd.xlane.f32.xlu0 %v32
    %v34 = vpop.xlane.xlu0 %33
    %v35 = vsel %vm31, %v28, 0.0
    %36 = vadd.xlane.f32.xlu0 %v35
    %v37 = vpop.xlane.xlu0 %36
    %v38 = vrcp.pop 32.0
    %v39 = vmul.f32 32.0, %v38
    %v40 = vsub.f32 1.0, %v39
    %v41 = vmul.f32 %v38, %v40
    %v42 = vadd.f32 %v38, %v41
    %vm43 = vweird.f32 %v38
    %v44 = vsel %vm43, %v38, %v42
    %v45 = vmul.f32 %v34, %v44
    %v46 = vmul.f32 %v37, %v44
    %v47 = vsub.f32 %v27, %v45
    %v48 = vsub.f32 %v28, %v46
    %v49 = vmul.f32 %v47, %v47
    %v50 = vmul.f32 %v48, %v48
    %v51 = vsel %vm31, %v49, 0.0
    %52 = vadd.xlane.f32.xlu0 %v51
    %v53 = vpop.xlane.xlu0 %52
    %v54 = vsel %vm31, %v50, 0.0
    %55 = vadd.xlane.f32.xlu0 %v54
    %v56 = vpop.xlane.xlu0 %55
    %v57 = vmul.f32 %v53, %v44
    %v58 = vmul.f32 %v56, %v44
    %v59 = vadd.f32 %v57, 1e-05
    %v60 = vadd.f32 %v58, 1e-05
    %v61 = vrsqrt.pop %v59
    %v62 = vmul.f32 %v61, %v59
    %v63 = vmul.f32 %v62, %v61
    %v64 = vmul.f32 0.5, %v63
    %v65 = vsub.f32 1.5, %v64
    %v66 = vmul.f32 %v61, %v65
    %vm67 = vweird.f32 %v59
    %vm68 = vweird.f32 %v61
    %vm69 = vmor %vm67, %vm68
    %v70 = vsel %vm69, %v61, %v66
    %v71 = vrsqrt.pop %v60
    %v72 = vmul.f32 %v71, %v60
    %v73 = vmul.f32 %v72, %v71
    %v74 = vmul.f32 0.5, %v73
    %v75 = vsub.f32 1.5, %v74
    %v76 = vmul.f32 %v71, %v75
    %vm77 = vweird.f32 %v60
    %vm78 = vweird.f32 %v71
    %vm79 = vmor %vm77, %vm78
    %v80 = vsel %vm79, %v71, %v76
    %v81 = vmul.f32 %v47, %v70
    %v82 = vmul.f32 %v48, %v80
    %v84 = vperm.slane %v29, 0
    %v86 = vmul.f32 %v81, %v84
    %v87 = vmul.f32 %v82, %v84
    %v89 = vperm.slane %v30, 0
    %v91 = vadd.f32 %v86, %v89
    %v92 = vadd.f32 %v87, %v89
    %v93 = vld [vmem:[%s3] sm:$0xff]
    %v94 = vld [vmem:[%s3 + $0x8] sm:$0xff]
    %v95 = vld [vmem:[%s3 + $0x10] sm:$0xff]
    %v96 = vld [vmem:[%s3 + $0x18] sm:$0xff]
    %v97 = vld [vmem:[%s4] sm:$0x1]
    %v99 = vperm.slane %v97, 0
    %v102 = vsel %vm31, %v91, 0
    %v105 = vsel %vm31, %v92, 0
    %107 = vmatpush.msra.mxu0 0.0
    %108 = vmatpush.msra.mxu0 0.0
    %109 = vmatpush.msra.mxu0 0.0
    %110 = vmatpush.msra.mxu0 0.0
    %111 = vmatpush.msra.mxu0 0.0
    %112 = vmatpush.msra.mxu0 0.0
    %113 = vmatpush.msra.mxu0 0.0
    %114 = vmatpush.msra.mxu0 0.0
    %115 = vmatpush.msra.mxu0 0.0
    %116 = vmatpush.msra.mxu0 0.0
    %117 = vmatpush.msra.mxu0 0.0
    %118 = vmatpush.msra.mxu0 0.0
    %119 = vmatpush.msra.mxu0 %v96
    %120 = vmatpush.msra.mxu0 %v95
    %121 = vmatpush.msra.mxu0 %v94
    %122 = vmatpush.msra.mxu0 %v93
    %123 = vmatmul.f32.gmra.mxu0 %v102
    %v124 = vpop.f32.mrf.mxu0
    %v125 = vadd.f32 %v99, %v124
    %126 = vmatmul.f32.gmra.mxu0 %v105
    %v127 = vpop.f32.mrf.mxu0
    %v128 = vadd.f32 %v99, %v127
    %129 = vdwg.mxu0
    %v130 = vmul.f32 %v125, 0.70710677
    %v131 = vmul.f32 %v128, 0.70710677
    %v132 = vmul.f32 %v130, %v130
    %v133 = vmin.f32 16.0, %v132
    %v134 = vmul.f32 %v133, 2.1237322e-06
    %v135 = vadd.f32 %v134, 0.00028619796
    %v136 = vmul.f32 %v133, %v135
    %v137 = vadd.f32 %v136, 0.0036580483
    %v138 = vmul.f32 %v133, %v137
    %v139 = vadd.f32 %v138, 0.05243302
    %v140 = vmul.f32 %v133, %v139
    %v141 = vadd.f32 %v140, 0.18741608
    %v142 = vmul.f32 %v133, %v141
    %v143 = vadd.f32 %v142, 1.1283791
    %v144 = vmul.f32 %v130, %v143
    %v145 = vmul.f32 %v133, 3.8918573e-05
    %v146 = vadd.f32 %v145, 0.001143296
    %v147 = vmul.f32 %v133, %v146
    %v148 = vadd.f32 %v147, 0.014752088
    %v149 = vmul.f32 %v133, %v148
    %v150 = vadd.f32 %v149, 0.112945676
    %v151 = vmul.f32 %v133, %v150
    %v152 = vadd.f32 %v151, 0.4994258
    %v153 = vmul.f32 %v133, %v152
    %v154 = vadd.f32 %v153, 1.0
    %v155 = vrcp.pop %v154
    %v156 = vmul.f32 %v154, %v155
    %v157 = vsub.f32 1.0, %v156
    %v158 = vmul.f32 %v155, %v157
    %v159 = vadd.f32 %v155, %v158
    %vm160 = vweird.f32 %v154
    %vm161 = vweird.f32 %v155
    %vm162 = vmor %vm160, %vm161
    %v163 = vsel %vm162, %v155, %v159
    %v164 = vand.u32 2147483647, %v154
    %vm165 = vcmp.eq.f32.partialorder %v164, 8.507059e+37
    %v166 = vand.u32 %v154, 2147483648
    %v167 = vor.u32 1.1754944e-38, %v166
    %v168 = vsel %vm165, %v167, %v163
    %v169 = vmul.f32 %v144, %v168
    %v170 = vmin.f32 %v169, 1.0
    %v171 = vmax.f32 %v170, -1.0
    %v172 = vmul.f32 %v131, %v131
    %v173 = vmin.f32 16.0, %v172
    %v174 = vmul.f32 %v173, 2.1237322e-06
    %v175 = vadd.f32 %v174, 0.00028619796
    %v176 = vmul.f32 %v173, %v175
    %v177 = vadd.f32 %v176, 0.0036580483
    %v178 = vmul.f32 %v173, %v177
    %v179 = vadd.f32 %v178, 0.05243302
    %v180 = vmul.f32 %v173, %v179
    %v181 = vadd.f32 %v180, 0.18741608
    %v182 = vmul.f32 %v173, %v181
    %v183 = vadd.f32 %v182, 1.1283791
    %v184 = vmul.f32 %v131, %v183
    %v185 = vmul.f32 %v173, 3.8918573e-05
    %v186 = vadd.f32 %v185, 0.001143296
    %v187 = vmul.f32 %v173, %v186
    %v188 = vadd.f32 %v187, 0.014752088
    %v189 = vmul.f32 %v173, %v188
    %v190 = vadd.f32 %v189, 0.112945676
    %v191 = vmul.f32 %v173, %v190
    %v192 = vadd.f32 %v191, 0.4994258
    %v193 = vmul.f32 %v173, %v192
    %v194 = vadd.f32 %v193, 1.0
    %v195 = vrcp.pop %v194
    %v196 = vmul.f32 %v194, %v195
    %v197 = vsub.f32 1.0, %v196
    %v198 = vmul.f32 %v195, %v197
    %v199 = vadd.f32 %v195, %v198
    %vm200 = vweird.f32 %v194
    %vm201 = vweird.f32 %v195
    %vm202 = vmor %vm200, %vm201
    %v203 = vsel %vm202, %v195, %v199
    %v204 = vand.u32 2147483647, %v194
    %vm205 = vcmp.eq.f32.partialorder %v204, 8.507059e+37
    %v206 = vand.u32 %v194, 2147483648
    %v207 = vor.u32 1.1754944e-38, %v206
    %v208 = vsel %vm205, %v207, %v203
    %v209 = vmul.f32 %v184, %v208
    %v210 = vmin.f32 %v209, 1.0
    %v211 = vmax.f32 %v210, -1.0
    %v212 = vmul.f32 %v125, 0.5
    %v213 = vmul.f32 %v128, 0.5
    %v214 = vadd.f32 %v171, 1.0
    %v215 = vadd.f32 %v211, 1.0
    %v216 = vmul.f32 %v212, %v214
    %v217 = vmul.f32 %v213, %v215
    %v218 = vld [vmem:[%s5] sm:$0xff]
    %v219 = vld [vmem:[%s5 + $0x8] sm:$0xff]
    %v220 = vld [vmem:[%s5 + $0x10] sm:$0xff]
    %v221 = vld [vmem:[%s5 + $0x18] sm:$0xff]
    %v222 = vld [vmem:[%s5 + $0x20] sm:$0xff]
    %v223 = vld [vmem:[%s5 + $0x28] sm:$0xff]
    %v224 = vld [vmem:[%s5 + $0x30] sm:$0xff]
    %v225 = vld [vmem:[%s5 + $0x38] sm:$0xff]
    %v226 = vld [vmem:[%s6] sm:$0x1]
    %v228 = vperm.slane %v226, 0
    %vm230 = vcmask 523264
    %v232 = vsel %vm230, %v216, 0
    %v235 = vsel %vm230, %v217, 0
    %237 = vmatpush.msra.mxu0 0.0
    %238 = vmatpush.msra.mxu0 0.0
    %239 = vmatpush.msra.mxu0 0.0
    %240 = vmatpush.msra.mxu0 0.0
    %241 = vmatpush.msra.mxu0 0.0
    %242 = vmatpush.msra.mxu0 0.0
    %243 = vmatpush.msra.mxu0 0.0
    %244 = vmatpush.msra.mxu0 0.0
    %245 = vmatpush.msra.mxu0 %v225
    %246 = vmatpush.msra.mxu0 %v224
    %247 = vmatpush.msra.mxu0 %v223
    %248 = vmatpush.msra.mxu0 %v222
    %249 = vmatpush.msra.mxu0 %v221
    %250 = vmatpush.msra.mxu0 %v220
    %251 = vmatpush.msra.mxu0 %v219
    %252 = vmatpush.msra.mxu0 %v218
    %253 = vmatmul.f32.gmra.mxu0 %v232
    %v254 = vpop.f32.mrf.mxu0
    %v255 = vadd.f32 %v228, %v254
    %256 = vmatmul.f32.gmra.mxu0 %v235
    %v257 = vpop.f32.mrf.mxu0
    %v258 = vadd.f32 %v228, %v257
    %259 = vdwg.mxu0
    %260 = vst.msk [vmem:[#allocation2] sm:$0xff] %vm31, %v255
    %261 = vst.msk [vmem:[#allocation2 + $0x8] sm:$0xff] %vm31, %v258
    // Predicated region
    $region30: #{tpu_custom_call.1} parent=1 // pred_check
      _
    $region31: #{tpu_custom_call.1} parent=1 // pred_check_branch
      %263 = sbr.rel (0) target = $region33
    $region32: #{tpu_custom_call.1} parent=1 // pred_region
      %265 = vsyncadd [#allocation3], 0
      %s266 = sshll.u32 [#allocation2], 4
      %s267 = int_to_ptr.vmem [resolvable:$true] %s266
      %s268 = sshll.u32 %s7, 4
      %s269 = int_to_ptr.hbm [resolvable:$true] %s268
      %274 = dma.vmem_to_hbm [thread:$0]  %s267, 256, %s269, [#allocation3], 128, 128, 8
    $region33: #{tpu_custom_call.1} parent=1 // pred_fallthru
      _
    // Predicated region
    $region34: #{tpu_custom_call.1} parent=1 // pred_check
      _
    $region35: #{tpu_custom_call.1} parent=1 // pred_check_branch
      %276 = sbr.rel (0) target = $region37
    $region36: #{tpu_custom_call.1} parent=1 // pred_region
      %278 = dma.done [#allocation3], 256
    $region37: #{tpu_custom_call.1} parent=1 // pred_fallthru
      _
    %279 = vsyncpa [#allocation3], 1

</llo_original>
